<compile_context>
chip_gen: v7x
topology: tpu7x:2x2x1
jax: 0.10.0
libtpu: 0.0.40
codegen_flags: <defaults>
</compile_context>

<pallas_src>
import functools

import jax
import jax.numpy as jnp
import numpy as np
from jax.experimental import pallas as pl
from jax.experimental.pallas import tpu as pltpu

SMOOTH = 1e-5


def _dice_kernel(x_ref, t_ref, w_ref, out_ref, acc_i, acc_z, acc_y, *,
                 n_classes, hw, tile, use_softmax, mask_tail):
    s_idx = pl.program_id(1)

    @pl.when(s_idx == 0)
    def _():
        acc_i[...] = jnp.zeros_like(acc_i)
        acc_z[...] = jnp.zeros_like(acc_z)
        acc_y[...] = jnp.zeros_like(acc_y)

    # Native-dtype block -> f32 inside the kernel (v5e VPU has no bf16).
    score = x_ref[0].astype(jnp.float32)          # (C, T)
    if use_softmax:
        m = jnp.max(score, axis=0, keepdims=True)           # (1, T)
        e = jnp.exp(score - m)                               # (C, T)
        denom = jnp.sum(e, axis=0, keepdims=True)            # (1, T)
        score = e * pl.reciprocal(denom, approx=False)       # 1 recip + C muls

    labels = t_ref[0].astype(jnp.int32)           # (1, T)

    if mask_tail:
        # Mask out-of-range spatial positions of the (padded) last tile.
        pos = s_idx * tile + jax.lax.broadcasted_iota(jnp.int32, (1, tile), 1)
        valid = pos < hw
        score = jnp.where(valid, score, 0.0)
        labels = jnp.where(valid, labels, -1)

    class_idx = jax.lax.broadcasted_iota(jnp.int32, (n_classes, tile), 0)
    onehot = class_idx == labels                  # bool (C, T), no f32 one-hot

    acc_i[...] += jnp.sum(jnp.where(onehot, score, 0.0), axis=-1, keepdims=True)
    acc_z[...] += jnp.sum(score * score, axis=-1, keepdims=True)
    acc_y[...] += jnp.sum(onehot, axis=-1, keepdims=True).astype(jnp.float32)

    @pl.when(s_idx == pl.num_programs(1) - 1)
    def _():
        dice = (2.0 * acc_i[...] + SMOOTH) / (acc_z[...] + acc_y[...] + SMOOTH)
        per_batch = jnp.sum(w_ref[...] * (1.0 - dice))       # scalar for this b
        out_ref[...] = jnp.broadcast_to(per_batch, out_ref.shape)


def _choose_tile(hw, n_classes, itemsize):
    """Pick a spatial tile width (multiple of 128) with bounded VMEM use."""
    hw_pad = 128 * ((hw + 127) // 128)
    budget = 8 * 1024 * 1024                       # bytes, double-buffered blocks
    per_elem = 2 * (n_classes * itemsize + 1)      # score (2 bufs) + int8 labels
    t = budget // per_elem
    t = min(t, 128 * 1024)
    t = max(t, 512)
    t = (t // 128) * 128
    return int(min(t, hw_pad))


def dice_loss(inputs, target, weight=None, softmax=False):
    """Pallas TPU implementation of DiceLoss(n_classes).forward (batch=False)."""
    B, C, H, W = inputs.shape
    HW = H * W

    x = inputs.reshape(B, C, HW)                   # native dtype, no upcast
    if C <= 127:
        t = target.reshape(B, 1, HW).astype(jnp.int8)
    else:
        t = target.reshape(B, 1, HW).astype(jnp.int32)
    if weight is None:
        w = jnp.ones((C, 1), jnp.float32)
    else:
        w = jnp.asarray(weight, jnp.float32).reshape(C, 1)

    itemsize = jnp.dtype(x.dtype).itemsize
    T = _choose_tile(HW, C, itemsize)
    n_spatial = pl.cdiv(HW, T)
    mask_tail = (HW % T) != 0

    kernel = functools.partial(
        _dice_kernel, n_classes=C, hw=HW, tile=T,
        use_softmax=softmax, mask_tail=mask_tail)

    per_batch = pl.pallas_call(
        kernel,
        out_shape=jax.ShapeDtypeStruct((B, 1, 128), jnp.float32),
        grid_spec=pltpu.PrefetchScalarGridSpec(
            num_scalar_prefetch=0,
            grid=(B, n_spatial),
            in_specs=[
                pl.BlockSpec((1, C, T), lambda b, s: (b, 0, s)),   # score tile
                pl.BlockSpec((1, 1, T), lambda b, s: (b, 0, s)),   # label tile
                pl.BlockSpec((C, 1), lambda b, s: (0, 0)),         # class weights
            ],
            out_specs=pl.BlockSpec((1, 1, 128), lambda b, s: (b, 0, 0)),
            scratch_shapes=[pltpu.VMEM((C, 1), jnp.float32),       # intersect
                            pltpu.VMEM((C, 1), jnp.float32),       # z_sum
                            pltpu.VMEM((C, 1), jnp.float32)],      # y_sum
        ),
        compiler_params=pltpu.CompilerParams(
            dimension_semantics=("parallel", "arbitrary"),
            vmem_limit_bytes=32 * 1024 * 1024),
    )(x, t, w)

    # loss = (1/(B*C)) * sum_b sum_i w_i * (1 - dice_{b,i})
    return jnp.sum(per_batch[:, 0, 0]) / float(B * C)


def dice_loss_ref(inputs, target, weight=None, softmax=False):
    """Pure-JAX reference mirroring the PyTorch forward (batch=False)."""
    if softmax:
        inputs = jax.nn.softmax(inputs, axis=1)
    B, C, H, W = inputs.shape
    onehot = jax.nn.one_hot(target, C, axis=1, dtype=jnp.float32)
    if weight is None:
        weight = [1.0] * C
    loss = 0.0
    for i in range(C):
        s = inputs[:, i].astype(jnp.float32)
        tt = onehot[:, i]
        intersect = jnp.sum(s * tt, axis=(1, 2))
        y_sum = jnp.sum(tt * tt, axis=(1, 2))
        z_sum = jnp.sum(s * s, axis=(1, 2))
        dice = (2.0 * intersect + SMOOTH) / (z_sum + y_sum + SMOOTH)
        loss = loss + jnp.mean(1.0 - dice) * weight[i]
    return loss / C


if __name__ == "__main__":
    B, C, H, W = 2, 4, 16, 16
    key = jax.random.PRNGKey(0)
    k1, k2, k3, k4 = jax.random.split(key, 4)

    inputs = jax.random.uniform(k1, (B, C, H, W), dtype=jnp.float32)
    target = jax.random.randint(k2, (B, H, W), 0, C, dtype=jnp.int32)

    # default path (softmax=False, uniform weights)
    loss = jax.block_until_ready(dice_loss(inputs, target))
    loss_ref = jax.block_until_ready(dice_loss_ref(inputs, target))
    np.testing.assert_allclose(np.asarray(loss), np.asarray(loss_ref),
                               rtol=1e-5, atol=1e-5)

    # softmax=True path with explicit per-class weights
    wts = [1.0, 2.0, 0.5, 1.5]
    loss_sm = jax.block_until_ready(
        dice_loss(inputs, target, weight=wts, softmax=True))
    loss_sm_ref = jax.block_until_ready(
        dice_loss_ref(inputs, target, weight=wts, softmax=True))
    np.testing.assert_allclose(np.asarray(loss_sm), np.asarray(loss_sm_ref),
                               rtol=1e-5, atol=1e-5)

    # native bf16 streaming path (cast to f32 inside the kernel)
    inputs_bf16 = inputs.astype(jnp.bfloat16)
    loss_bf = jax.block_until_ready(dice_loss(inputs_bf16, target))
    loss_bf_ref = jax.block_until_ready(
        dice_loss_ref(inputs_bf16.astype(jnp.float32), target))
    np.testing.assert_allclose(np.asarray(loss_bf), np.asarray(loss_bf_ref),
                               rtol=1e-4, atol=1e-4)

    # tail-masking path: spatial size not a multiple of 128
    inputs2 = jax.random.uniform(k3, (2, 3, 13, 13), dtype=jnp.float32)
    target2 = jax.random.randint(k4, (2, 13, 13), 0, 3, dtype=jnp.int32)
    loss2 = jax.block_until_ready(dice_loss(inputs2, target2, softmax=True))
    loss2_ref = jax.block_until_ready(
        dice_loss_ref(inputs2, target2, softmax=True))
    np.testing.assert_allclose(np.asarray(loss2), np.asarray(loss2_ref),
                               rtol=1e-5, atol=1e-5)

    print("KERNEL_OK")
</pallas_src>

<mosaic_0001>
module attributes {stable_mosaic.version = 11 : i64} {
  func.func @_dice_kernel(%arg0: i32, %arg1: i32, %arg2: memref<1x4x256xf32, #tpu.memory_space<vmem>>, %arg3: memref<1x1x256xi8, #tpu.memory_space<vmem>>, %arg4: memref<4x1xf32, #tpu.memory_space<vmem>>, %arg5: memref<1x1x128xf32, #tpu.memory_space<vmem>>, %arg6: memref<4x1xf32, #tpu.memory_space<vmem>>, %arg7: memref<4x1xf32, #tpu.memory_space<vmem>>, %arg8: memref<4x1xf32, #tpu.memory_space<vmem>>) attributes {dimension_semantics = [#tpu.dimension_semantics<parallel>, #tpu.dimension_semantics<arbitrary>], iteration_bounds = array<i64: 2, 1>, scalar_prefetch = 0 : i64, scratch_operands = 3 : i64, tpu.core_type = #tpu.core_type<tc>, window_params = [{transform_indices = @transform_0, window_bounds = array<i64: 1, 4, 256>}, {transform_indices = @transform_1, window_bounds = array<i64: 1, 1, 256>}, {pipeline_mode = #tpu.pipeline_mode<synchronous>, transform_indices = @transform_2, window_bounds = array<i64: 4, 1>}, {transform_indices = @transform_3, window_bounds = array<i64: 1, 1, 128>}]} {
    %c0_i32 = arith.constant 0 : i32
    %0 = arith.cmpi eq, %arg1, %c0_i32 : i32
    %1 = arith.extui %0 : i1 to i32
    %c0_i32_0 = arith.constant 0 : i32
    %2 = arith.cmpi ne, %1, %c0_i32_0 : i32
    scf.if %2 {
      %cst_23 = arith.constant 0.000000e+00 : f32
      %34 = vector.broadcast %cst_23 : f32 to vector<4x1xf32>
      %c0_24 = arith.constant 0 : index
      %c0_25 = arith.constant 0 : index
      %35 = vector.load %arg6[%c0_24, %c0_25] : memref<4x1xf32, #tpu.memory_space<vmem>>, vector<4x1xf32>
      tpu.vector_store %arg6[%c0_24, %c0_25], %34 {strides = array<i32>} : memref<4x1xf32, #tpu.memory_space<vmem>>, vector<4x1xf32>,
      %cst_26 = arith.constant 0.000000e+00 : f32
      %36 = vector.broadcast %cst_26 : f32 to vector<4x1xf32>
      %c0_27 = arith.constant 0 : index
      %c0_28 = arith.constant 0 : index
      %37 = vector.load %arg7[%c0_27, %c0_28] : memref<4x1xf32, #tpu.memory_space<vmem>>, vector<4x1xf32>
      tpu.vector_store %arg7[%c0_27, %c0_28], %36 {strides = array<i32>} : memref<4x1xf32, #tpu.memory_space<vmem>>, vector<4x1xf32>,
      %cst_29 = arith.constant 0.000000e+00 : f32
      %38 = vector.broadcast %cst_29 : f32 to vector<4x1xf32>
      %c0_30 = arith.constant 0 : index
      %c0_31 = arith.constant 0 : index
      %39 = vector.load %arg8[%c0_30, %c0_31] : memref<4x1xf32, #tpu.memory_space<vmem>>, vector<4x1xf32>
      tpu.vector_store %arg8[%c0_30, %c0_31], %38 {strides = array<i32>} : memref<4x1xf32, #tpu.memory_space<vmem>>, vector<4x1xf32>,
    } else {
    }
    %c0 = arith.constant 0 : index
    %c0_1 = arith.constant 0 : index
    %c0_2 = arith.constant 0 : index
    %3 = vector.load %arg2[%c0, %c0_1, %c0_2] : memref<1x4x256xf32, #tpu.memory_space<vmem>>, vector<1x4x256xf32>
    %4 = vector.shape_cast %3 : vector<1x4x256xf32> to vector<4x256xf32>
    %c0_3 = arith.constant 0 : index
    %c0_4 = arith.constant 0 : index
    %c0_5 = arith.constant 0 : index
    %5 = vector.load %arg3[%c0_3, %c0_4, %c0_5] : memref<1x1x256xi8, #tpu.memory_space<vmem>>, vector<1x1x256xi8>
    %6 = vector.shape_cast %5 : vector<1x1x256xi8> to vector<1x256xi8>
    %7 = arith.extsi %6 : vector<1x256xi8> to vector<1x256xi32>
    %8 = tpu.iota {dimensions = array<i32: 0>} : vector<4x256xi32>
    %9 = vector.broadcast %7 : vector<1x256xi32> to vector<4x256xi32>
    %10 = arith.cmpi eq, %8, %9 : vector<4x256xi32>
    %c0_6 = arith.constant 0 : index
    %c0_7 = arith.constant 0 : index
    %11 = vector.load %arg6[%c0_6, %c0_7] : memref<4x1xf32, #tpu.memory_space<vmem>>, vector<4x1xf32>
    %cst = arith.constant 0.000000e+00 : f32
    %12 = vector.broadcast %cst : f32 to vector<4x256xf32>
    %13 = arith.select %10, %4, %12 : vector<4x256xi1>, vector<4x256xf32>
    %cst_8 = arith.constant dense<0.000000e+00> : vector<4xf32>
    %14 = vector.multi_reduction <add>, %13, %cst_8 [1] : vector<4x256xf32> to vector<4xf32>
    %15 = vector.shape_cast %14 : vector<4xf32> to vector<4x1xf32>
    %16 = arith.addf %11, %15 : vector<4x1xf32>
    %c0_9 = arith.constant 0 : index
    %c0_10 = arith.constant 0 : index
    %17 = vector.load %arg6[%c0_9, %c0_10] : memref<4x1xf32, #tpu.memory_space<vmem>>, vector<4x1xf32>
    tpu.vector_store %arg6[%c0_9, %c0_10], %16 {strides = array<i32>} : memref<4x1xf32, #tpu.memory_space<vmem>>, vector<4x1xf32>,
    %c0_11 = arith.constant 0 : index
    %c0_12 = arith.constant 0 : index
    %18 = vector.load %arg7[%c0_11, %c0_12] : memref<4x1xf32, #tpu.memory_space<vmem>>, vector<4x1xf32>
    %19 = arith.mulf %4, %4 : vector<4x256xf32>
    %cst_13 = arith.constant dense<0.000000e+00> : vector<4xf32>
    %20 = vector.multi_reduction <add>, %19, %cst_13 [1] : vector<4x256xf32> to vector<4xf32>
    %21 = vector.shape_cast %20 : vector<4xf32> to vector<4x1xf32>
    %22 = arith.addf %18, %21 : vector<4x1xf32>
    %c0_14 = arith.constant 0 : index
    %c0_15 = arith.constant 0 : index
    %23 = vector.load %arg7[%c0_14, %c0_15] : memref<4x1xf32, #tpu.memory_space<vmem>>, vector<4x1xf32>
    tpu.vector_store %arg7[%c0_14, %c0_15], %22 {strides = array<i32>} : memref<4x1xf32, #tpu.memory_space<vmem>>, vector<4x1xf32>,
    %c0_16 = arith.constant 0 : index
    %c0_17 = arith.constant 0 : index
    %24 = vector.load %arg8[%c0_16, %c0_17] : memref<4x1xf32, #tpu.memory_space<vmem>>, vector<4x1xf32>
    %25 = arith.extui %10 : vector<4x256xi1> to vector<4x256xi32>
    %cst_18 = arith.constant dense<0> : vector<4xi32>
    %26 = vector.multi_reduction <add>, %25, %cst_18 [1] : vector<4x256xi32> to vector<4xi32>
    %27 = vector.shape_cast %26 : vector<4xi32> to vector<4x1xi32>
    %28 = arith.sitofp %27 : vector<4x1xi32> to vector<4x1xf32>
    %29 = arith.addf %24, %28 : vector<4x1xf32>
    %c0_19 = arith.constant 0 : index
    %c0_20 = arith.constant 0 : index
    %30 = vector.load %arg8[%c0_19, %c0_20] : memref<4x1xf32, #tpu.memory_space<vmem>>, vector<4x1xf32>
    tpu.vector_store %arg8[%c0_19, %c0_20], %29 {strides = array<i32>} : memref<4x1xf32, #tpu.memory_space<vmem>>, vector<4x1xf32>,
    %c0_i32_21 = arith.constant 0 : i32
    %31 = arith.cmpi eq, %arg1, %c0_i32_21 : i32
    %32 = arith.extui %31 : i1 to i32
    %c0_i32_22 = arith.constant 0 : i32
    %33 = arith.cmpi ne, %32, %c0_i32_22 : i32
    scf.if %33 {
      %c0_23 = arith.constant 0 : index
      %c0_24 = arith.constant 0 : index
      %34 = vector.load %arg6[%c0_23, %c0_24] : memref<4x1xf32, #tpu.memory_space<vmem>>, vector<4x1xf32>
      %cst_25 = arith.constant 2.000000e+00 : f32
      %35 = vector.broadcast %cst_25 : f32 to vector<4x1xf32>
      %36 = arith.mulf %35, %34 : vector<4x1xf32>
      %cst_26 = arith.constant 9.99999974E-6 : f32
      %37 = vector.broadcast %cst_26 : f32 to vector<4x1xf32>
      %38 = arith.addf %36, %37 : vector<4x1xf32>
      %c0_27 = arith.constant 0 : index
      %c0_28 = arith.constant 0 : index
      %39 = vector.load %arg7[%c0_27, %c0_28] : memref<4x1xf32, #tpu.memory_space<vmem>>, vector<4x1xf32>
      %c0_29 = arith.constant 0 : index
      %c0_30 = arith.constant 0 : index
      %40 = vector.load %arg8[%c0_29, %c0_30] : memref<4x1xf32, #tpu.memory_space<vmem>>, vector<4x1xf32>
      %41 = arith.addf %39, %40 : vector<4x1xf32>
      %cst_31 = arith.constant 9.99999974E-6 : f32
      %42 = vector.broadcast %cst_31 : f32 to vector<4x1xf32>
      %43 = arith.addf %41, %42 : vector<4x1xf32>
      %44 = arith.divf %38, %43 : vector<4x1xf32>
      %c0_32 = arith.constant 0 : index
      %c0_33 = arith.constant 0 : index
      %45 = vector.load %arg4[%c0_32, %c0_33] : memref<4x1xf32, #tpu.memory_space<vmem>>, vector<4x1xf32>
      %cst_34 = arith.constant 1.000000e+00 : f32
      %46 = vector.broadcast %cst_34 : f32 to vector<4x1xf32>
      %47 = arith.subf %46, %44 : vector<4x1xf32>
      %48 = arith.mulf %45, %47 : vector<4x1xf32>
      %49 = vector.shape_cast %48 : vector<4x1xf32> to vector<1x4x1xf32>
      %cst_35 = arith.constant dense<0.000000e+00> : vector<1xf32>
      %50 = vector.multi_reduction <add>, %49, %cst_35 [1, 2] : vector<1x4x1xf32> to vector<1xf32>
      %51 = vector.shape_cast %50 : vector<1xf32> to vector<1x1x1xf32>
      %52 = vector.extract %51[0, 0, 0] : f32 from vector<1x1x1xf32>
      %53 = vector.broadcast %52 : f32 to vector<1x1x128xf32>
      %c0_36 = arith.constant 0 : index
      %c0_37 = arith.constant 0 : index
      %c0_38 = arith.constant 0 : index
      %54 = vector.load %arg5[%c0_36, %c0_37, %c0_38] : memref<1x1x128xf32, #tpu.memory_space<vmem>>, vector<1x1x128xf32>
      tpu.vector_store %arg5[%c0_36, %c0_37, %c0_38], %53 {strides = array<i32>} : memref<1x1x128xf32, #tpu.memory_space<vmem>>, vector<1x1x128xf32>,
    } else {
    }
    return
  }
  func.func @transform_0(%arg0: i32, %arg1: i32) -> (i32, i32, i32) {
    %c0_i32 = arith.constant 0 : i32
    %c0_i32_0 = arith.constant 0 : i32
    return %arg0, %c0_i32, %arg1 : i32, i32, i32
  }
  func.func @transform_1(%arg0: i32, %arg1: i32) -> (i32, i32, i32) {
    %c0_i32 = arith.constant 0 : i32
    %c0_i32_0 = arith.constant 0 : i32
    return %arg0, %c0_i32, %arg1 : i32, i32, i32
  }
  func.func @transform_2(%arg0: i32, %arg1: i32) -> (i32, i32) {
    %c0_i32 = arith.constant 0 : i32
    %c0_i32_0 = arith.constant 0 : i32
    %c0_i32_1 = arith.constant 0 : i32
    return %c0_i32, %c0_i32_0 : i32, i32
  }
  func.func @transform_3(%arg0: i32, %arg1: i32) -> (i32, i32, i32) {
    %c0_i32 = arith.constant 0 : i32
    %c0_i32_0 = arith.constant 0 : i32
    %c0_i32_1 = arith.constant 0 : i32
    return %arg0, %c0_i32, %c0_i32_0 : i32, i32, i32
  }
}

</mosaic_0001>

<llo_original>
// kernel: tpu_custom_call.1
$region0: #{tpu_custom_call.1}
  #allocation0 [shape = 'u32[]', space=smem, size = 0x4, offset = 0x4, fixed_abs, tag = 'smem constant byte address 0x4 - core index']
  #allocation1 [shape = 'u32[144,128]{1,0:T(1,128)}', space=vmem, size = 0x12000, scoped, tag = 'internal scratch']
  #allocation2 [shape = 'f32[4,1]{1,0:T(4,128)}', space=vmem, size = 0x800, scoped, tag = 'scratch operand']
  #allocation3 [shape = 'f32[4,1]{1,0:T(4,128)}', space=vmem, size = 0x800, scoped, tag = 'scratch operand']
  #allocation4 [shape = 'f32[4,1]{1,0:T(4,128)}', space=vmem, size = 0x800, scoped, tag = 'scratch operand']
  %s0 = inlined_call_operand.hbm [shape: f32[2,4,256], index: 0, kind: input, shape index: {}]
  %s1 = inlined_call_operand.vmem [shape: s8[2,1,256], index: 1, kind: input, shape index: {}]
  %s2 = inlined_call_operand.vmem [shape: f32[4,1], index: 2, kind: input, shape index: {}]
  %s3 = inlined_call_operand.hbm [shape: f32[2,1,128], index: 3, kind: output, shape index: {}]
  %s4 = sld [smem:[#allocation0]]
  $region57: #{tpu_custom_call.1} parent=0
    _
  %s6 = ssub.s32 1, %s4
  %s7 = scalar_select 0, %s6, %s4
  $region1: #{tpu_custom_call.1} parent=0
    #allocation5 [shape = 'u8[8192]{0}', space=vmem, size = 0x2000, scoped, tag = 'input window, operand 0']
    #allocation6 [shape = 's32[2]{0}', space=sflag, size = 0x8, scoped, tag = 'scoped memory for tpu_custom_call.1']
    #allocation7 [shape = 's32[2]{0}', space=sflag, size = 0x8, scoped, tag = 'scoped memory for tpu_custom_call.1']
    #allocation8 [shape = 'u8[1024]{0}', space=vmem, size = 0x400, scoped, tag = 'output window, operand 0']
    %8 = vsyncpa [#allocation6], 0
    %s9 = scalar_lea.sflag [#allocation6], 1
    %10 = vsyncpa %s9, 0
    %11 = vsyncpa [#allocation7], 0
    %s12 = scalar_lea.sflag [#allocation7], 1
    %13 = vsyncpa %s12, 0
    loop: start=0, step=1, limit=4
    $region2: #{tpu_custom_call.1} parent=1 // loop_pre_header
      _
    $region3: #{tpu_custom_call.1} parent=1 // loop_header
      %s15 = sphi 0, %s19
      %p16 = scmp.ge.s32.totalorder %s15, 4
      %s22 = sphi 0, %s34
      %s23 = sphi 0, %s30
      %s24 = sphi 0, %s22
      %s25 = sphi 0, %s23
      %s26 = sphi 0, %s24
      %s27 = sphi 0, %s25
      %s39 = sphi 0, %s41
      %s42 = sphi 0, %s39
      %s43 = sphi 0, %s42
      %s59 = sphi 0, %s43
      %s67 = sphi 0, %s69
      %s70 = sphi 0, %s67
      %s71 = sphi 0, %s70
      %s87 = sphi 0, %s71
      %s91 = sphi 0, %s91
      %s93 = sphi 0, %s91
      %s94 = sphi 0, %s93
      %s108 = sphi 0, %s94
      %s114 = sphi 0, %s116
      %s117 = sphi 0, %s114
      %s118 = sphi 0, %s117
      %s134 = sphi 0, %s118
    $region4: #{tpu_custom_call.1} parent=1 // loop_header_branch
      %18 = sbr.rel (%p16) target = $region8
    $region5: #{tpu_custom_call.1} parent=1 // loop_body
      %s20 = ssub.s32 %s15, 1
      %s21 = ssub.s32 %s15, 2
      %s28 = sadd.s32 1, %s23
      %p29 = scmp.ge.s32.totalorder %s28, 1
      %s30 = scalar_select %p29, 0, %s28
      %s31 = sadd.s32 1, %s22
      %s32 = scalar_select %p29, %s31, %s22
      %p33 = scmp.ge.s32.totalorder %s32, 2
      %s34 = scalar_select %p33, 0, %s32
      %s35 = ssub.s32 %s22, %s34
      %s36 = ssub.s32 %s23, %s30
      %s37 = sor.u32 %s35, %s36
      %p38 = scmp.eq.s32.totalorder %s37, 0
      %s40 = sadd.s32 %s39, 1
      %s41 = scalar_select %p38, %s39, %s40
      %p44 = pneg %p38
      %p45 = scmp.eq.s32.totalorder %s15, 1
      %p46 = por %p44, %p45
      %p47 = scmp.ne.s32.totalorder %s39, %s42
      %p48 = scmp.eq.s32.totalorder %s15, 0
      %p49 = por %p47, %p48
      %p50 = scmp.ne.s32.totalorder %s39, %s42
      %p51 = scmp.eq.s32.totalorder %s20, 1
      %p52 = por %p50, %p51
      %p53 = scmp.ne.s32.totalorder %s42, %s43
      %p54 = scmp.eq.s32.totalorder %s20, 0
      %p55 = por %p53, %p54
      %p56 = scmp.ne.s32.totalorder %s42, %s43
      %p57 = scmp.eq.s32.totalorder %s21, 1
      %p58 = por %p56, %p57
      %p60 = scmp.ne.s32.totalorder %s43, %s59
      %p61 = scmp.eq.s32.totalorder %s21, 0
      %p62 = por %p60, %p61
      %s63 = ssub.s32 %s22, %s34
      %s64 = ssub.s32 %s23, %s30
      %s65 = sor.u32 %s63, %s64
      %p66 = scmp.eq.s32.totalorder %s65, 0
      %s68 = sadd.s32 %s67, 1
      %s69 = scalar_select %p66, %s67, %s68
      %p72 = pneg %p66
      %p73 = scmp.eq.s32.totalorder %s15, 1
      %p74 = por %p72, %p73
      %p75 = scmp.ne.s32.totalorder %s67, %s70
      %p76 = scmp.eq.s32.totalorder %s15, 0
      %p77 = por %p75, %p76
      %p78 = scmp.ne.s32.totalorder %s67, %s70
      %p79 = scmp.eq.s32.totalorder %s20, 1
      %p80 = por %p78, %p79
      %p81 = scmp.ne.s32.totalorder %s70, %s71
      %p82 = scmp.eq.s32.totalorder %s20, 0
      %p83 = por %p81, %p82
      %p84 = scmp.ne.s32.totalorder %s70, %s71
      %p85 = scmp.eq.s32.totalorder %s21, 1
      %p86 = por %p84, %p85
      %p88 = scmp.ne.s32.totalorder %s71, %s87
      %p89 = scmp.eq.s32.totalorder %s21, 0
      %p90 = por %p88, %p89
      %s92 = sadd.s32 %s91, 1
      %p95 = scmp.eq.s32.totalorder %s15, 1
      %p96 = scmp.ne.s32.totalorder %s91, %s93
      %p97 = scmp.eq.s32.totalorder %s15, 0
      %p98 = por %p96, %p97
      %p99 = scmp.ne.s32.totalorder %s91, %s93
      %p100 = scmp.eq.s32.totalorder %s20, 1
      %p101 = por %p99, %p100
      %p102 = scmp.ne.s32.totalorder %s93, %s94
      %p103 = scmp.eq.s32.totalorder %s20, 0
      %p104 = por %p102, %p103
      %p105 = scmp.ne.s32.totalorder %s93, %s94
      %p106 = scmp.eq.s32.totalorder %s21, 1
      %p107 = por %p105, %p106
      %p109 = scmp.ne.s32.totalorder %s94, %s108
      %p110 = scmp.eq.s32.totalorder %s21, 0
      %p111 = por %p109, %p110
      %s112 = ssub.s32 %s22, %s34
      %p113 = scmp.eq.s32.totalorder %s112, 0
      %s115 = sadd.s32 %s114, 1
      %s116 = scalar_select %p113, %s114, %s115
      %p119 = pneg %p113
      %p120 = scmp.eq.s32.totalorder %s15, 1
      %p121 = por %p119, %p120
      %p122 = scmp.ne.s32.totalorder %s114, %s117
      %p123 = scmp.eq.s32.totalorder %s15, 0
      %p124 = por %p122, %p123
      %p125 = scmp.ne.s32.totalorder %s114, %s117
      %p126 = scmp.eq.s32.totalorder %s20, 1
      %p127 = por %p125, %p126
      %p128 = scmp.ne.s32.totalorder %s117, %s118
      %p129 = scmp.eq.s32.totalorder %s20, 0
      %p130 = por %p128, %p129
      %p131 = scmp.ne.s32.totalorder %s117, %s118
      %p132 = scmp.eq.s32.totalorder %s21, 1
      %p133 = por %p131, %p132
      %p135 = scmp.ne.s32.totalorder %s118, %s134
      %p136 = scmp.eq.s32.totalorder %s21, 0
      %p137 = por %p135, %p136
      %p138 = scmp.le.s32.totalorder 1, %s15
      %p139 = scmp.lt.s32.totalorder %s15, 3
      %p140 = pnand %p138, %p139
      %p141 = pneg %p140
      // Predicated region
      $region9: #{tpu_custom_call.1} parent=5 // pred_check
        _
      $region10: #{tpu_custom_call.1} parent=5 // pred_check_branch
        %143 = sbr.rel (%p140) target = $region12
      $region11: #{tpu_custom_call.1} parent=5 // pred_region
        %s144 = ssub.s32 %s15, 1
        // Predicated region
        $region13: #{tpu_custom_call.1} parent=11 // pred_check
          %p145 = pneg %p104
        $region14: #{tpu_custom_call.1} parent=11 // pred_check_branch
          %147 = sbr.rel (%p145) target = $region16
        $region15: #{tpu_custom_call.1} parent=11 // pred_region
          _
        $region16: #{tpu_custom_call.1} parent=11 // pred_fallthru
          _
      $region12: #{tpu_custom_call.1} parent=5 // pred_fallthru
        _
      %p148 = scmp.lt.s32.totalorder %s15, 2
      // Predicated region
      $region17: #{tpu_custom_call.1} parent=5 // pred_check
        %p149 = pneg %p148
      $region18: #{tpu_custom_call.1} parent=5 // pred_check_branch
        %151 = sbr.rel (%p149) target = $region20
      $region19: #{tpu_custom_call.1} parent=5 // pred_region
        // Predicated region
        $region21: #{tpu_custom_call.1} parent=19 // pred_check
          %p152 = pneg %p49
        $region22: #{tpu_custom_call.1} parent=19 // pred_check_branch
          %154 = sbr.rel (%p152) target = $region24
        $region23: #{tpu_custom_call.1} parent=19 // pred_region
          %s155 = sand.u32 %s39, 1
          %s156 = scalar_lea.sflag [#allocation6], %s155
          %s157 = sand.u32 %s39, 1
          %s158 = smul.addr %s157, 8
          %s159 = scalar_lea.vmem [#allocation5], %s158
          %s160 = smul.u32 2, %s23
          %s162 = ssub.s32 128, 128
          %163 = vsyncadd %s156, %s162
          %s164 = smul.addr %s22, 2
          %s165 = sadd.s32 %s160, %s164
          %s166 = smul.addr %s165, 64
          %s167 = scalar_lea.hbm %s0, %s166
          %s169 = sshll.u32 %s159, 4
          %s170 = int_to_ptr.vmem [resolvable:$true] %s169
          %172 = dma.hbm_to_vmem [thread:$0]  %s167, 128, %s170, %s156
        $region24: #{tpu_custom_call.1} parent=19 // pred_fallthru
          _
        // Predicated region
        $region25: #{tpu_custom_call.1} parent=19 // pred_check
          %p173 = pneg %p77
        $region26: #{tpu_custom_call.1} parent=19 // pred_check_branch
          %175 = sbr.rel (%p173) target = $region28
        $region27: #{tpu_custom_call.1} parent=19 // pred_region
          %s176 = smul.u32 2, %s23
          %p177 = scmp.lt.s32.totalorder %s22, 1
          %s178 = scalar_select %p177, %s22, 1
          %p179 = scmp.lt.s32.totalorder %s176, 1
          %s180 = scalar_select %p179, %s176, 1
          %s181 = smul.addr %s178, 2
          %s182 = sadd.s32 %s180, %s181
          %s183 = scalar_lea.vmem %s1, %s182
          %s184 = smul.u32 2, %s23
        $region28: #{tpu_custom_call.1} parent=19 // pred_fallthru
          _
      $region20: #{tpu_custom_call.1} parent=5 // pred_fallthru
        _
      %p185 = scmp.le.s32.totalorder 1, %s15
      %p186 = scmp.lt.s32.totalorder %s15, 3
      %p187 = pnand %p185, %p186
      %p188 = pneg %p187
      // Predicated region
      $region29: #{tpu_custom_call.1} parent=5 // pred_check
        _
      $region30: #{tpu_custom_call.1} parent=5 // pred_check_branch
        %190 = sbr.rel (%p187) target = $region32
      $region31: #{tpu_custom_call.1} parent=5 // pred_region
        %s191 = ssub.s32 %s15, 1
        %s192 = sand.u32 %s42, 1
        %s193 = scalar_lea.sflag [#allocation6], %s192
        %s194 = sand.u32 %s42, 1
        %s195 = smul.addr %s194, 8
        %s196 = scalar_lea.vmem [#allocation5], %s195
        // Predicated region
        $region33: #{tpu_custom_call.1} parent=31 // pred_check
          %p197 = pneg %p55
        $region34: #{tpu_custom_call.1} parent=31 // pred_check_branch
          %199 = sbr.rel (%p197) target = $region36
        $region35: #{tpu_custom_call.1} parent=31 // pred_region
          %200 = dma.done %s193, 128
        $region36: #{tpu_custom_call.1} parent=31 // pred_fallthru
          _
        %s201 = sand.u32 %s42, 1
        %s202 = scalar_lea.sflag [#allocation6], %s201
        %s203 = sand.u32 %s42, 1
        %s204 = smul.addr %s203, 8
        %s205 = scalar_lea.vmem [#allocation5], %s204
        %p206 = pneg %p55
        %p207 = pneg %p52
        %s208 = smul.u32 2, %s25
        %p209 = scmp.lt.s32.totalorder %s24, 1
        %s210 = scalar_select %p209, %s24, 1
        %p211 = scmp.lt.s32.totalorder %s208, 1
        %s212 = scalar_select %p211, %s208, 1
        %s213 = smul.addr %s210, 2
        %s214 = sadd.s32 %s212, %s213
        %s215 = scalar_lea.vmem %s1, %s214
        %p216 = pneg %p83
        %p217 = pneg %p80
        %p218 = pneg %p104
        %p219 = pneg %p101
        %p220 = pneg %p130
        %p221 = pneg %p127
        %s222 = sand.u32 %s117, 1
        %s223 = scalar_lea.sflag [#allocation7], %s222
        %s224 = sand.u32 %s117, 1
        %s225 = scalar_lea.vmem [#allocation8], %s224
        %s226 = smul.u32 2, %s25
        %s227 = smul.u32 2, %s25
        %p228 = scmp.lt.s32.totalorder %s24, 1
        %s229 = scalar_select %p228, %s24, 1
        %p230 = scmp.lt.s32.totalorder %s227, 1
        %s231 = scalar_select %p230, %s227, 1
        %s232 = smul.addr %s229, 2
        %s233 = sadd.s32 %s231, %s232
        %s234 = scalar_lea.vmem %s1, %s233
        %s235 = smul.u32 2, %s25
        %p236 = scmp.eq.s32.totalorder %s25, 0
        // Predicated region
        $region37: #{tpu_custom_call.1} parent=31 // pred_check
          %p237 = pneg %p236
        $region38: #{tpu_custom_call.1} parent=31 // pred_check_branch
          %239 = sbr.rel (%p237) target = $region40
        $region39: #{tpu_custom_call.1} parent=31 // pred_region
          %vm240 = vcmask 3072
          %241 = vst.msk [vmem:[#allocation2] sm:$0xf] %vm240, 0.0
          %242 = vst.msk [vmem:[#allocation3] sm:$0xf] %vm240, 0.0
          %243 = vst.msk [vmem:[#allocation4] sm:$0xf] %vm240, 0.0
        $region40: #{tpu_custom_call.1} parent=31 // pred_fallthru
          _
        %v244 = vld [vmem:[%s196] sm:$0xff]
        %v245 = vld [vmem:[%s234] sm:$0x3]
        %v246 = vunpack.c.0.s8 %v245
        %v247 = vlaneseq
        %v248 = vshrl.u32 %v247, 7
        %v249 = vlaneseq
        %v250 = vshrl.u32 %v249, 7
        %v251 = vsub.s32 0, %v250
        %v252 = vrot.slane %v246, %v251
        %v253 = vlaneseq
        %v254 = vshrl.u32 %v253, 7
        %v255 = vsub.s32 4, %v254
        %v256 = vrot.slane %v246, %v255
        %v257 = vlaneseq
        %v258 = vshrl.u32 %v257, 7
        %v259 = vsub.s32 0, %v258
        %v260 = vrot.slane %v252, %v259
        %v261 = vlaneseq
        %v262 = vshrl.u32 %v261, 7
        %v263 = vsub.s32 0, %v262
        %v264 = vrot.slane %v256, %v263
        %vm265 = vcmp.eq.s32.totalorder %v248, %v260
        %vm266 = vcmp.eq.s32.totalorder %v248, %v264
        %v267 = vld [vmem:[#allocation2] sm:$0xf]
        %v269 = vcombine.high %v244, %v244
        %v271 = vsel %vm265, %v244, 0.0
        %v272 = vsel %vm266, %v269, 0.0
        %vm273 = vcmask 1043456
        %v274 = vsel %vm273, %v271, 0.0
        %v275 = vsel %vm273, %v272, 0.0
        %v276 = vadd.f32 %v274, %v275
        %277 = vadd.xlane.f32.xlu0 %v276
        %v278 = vpop.xlane.xlu0 %277
        %v279 = vadd.f32 %v267, %v278
        %vm280 = vcmask 3072
        %281 = vst.msk [vmem:[#allocation2] sm:$0xf] %vm280, %v279
        %v282 = vld [vmem:[#allocation3] sm:$0xf]
        %v283 = vmul.f32 %v244, %v244
        %v285 = vcombine.high %v283, %v283
        %v287 = vsel %vm273, %v283, 0.0
        %v288 = vsel %vm273, %v285, 0.0
        %v289 = vadd.f32 %v287, %v288
        %290 = vadd.xlane.f32.xlu0 %v289
        %v291 = vpop.xlane.xlu0 %290
        %v292 = vadd.f32 %v282, %v291
        %293 = vst.msk [vmem:[#allocation3] sm:$0xf] %vm280, %v292
        %v294 = vld [vmem:[#allocation4] sm:$0xf]
        %v295 = vsel %vm265, 1, 0
        %v296 = vsel %vm266, 1, 0
        %v297 = vsel %vm273, %v295, 0
        %v298 = vsel %vm273, %v296, 0
        %v299 = vadd.s32 %v297, %v298
        %v300 = vand.u32 %v299, 65535
        %v301 = vshrl.u32 %v299, 16
        %v302 = vcvt.s32.f32 %v300
        %v303 = vcvt.s32.f32 %v301
        %304 = vadd.xlane.f32.xlu0 %v302
        %v305 = vpop.xlane.xlu0 %304
        %306 = vadd.xlane.f32.xlu0 %v303
        %v307 = vpop.xlane.xlu0 %306
        %v308 = vcvt.f32.s32 %v305
        %v309 = vcvt.f32.s32 %v307
        %v310 = vshll.u32 %v309, 16
        %v311 = vadd.s32 %v310, %v308
        %v312 = vcvt.s32.f32 %v311
        %v313 = vadd.f32 %v294, %v312
        %314 = vst.msk [vmem:[#allocation4] sm:$0xf] %vm280, %v313
        // Predicated region
        $region41: #{tpu_custom_call.1} parent=31 // pred_check
          %p315 = pneg %p236
        $region42: #{tpu_custom_call.1} parent=31 // pred_check_branch
          %317 = sbr.rel (%p315) target = $region44
        $region43: #{tpu_custom_call.1} parent=31 // pred_region
          %v318 = vld [vmem:[#allocation2] sm:$0xf]
          %v319 = vmul.f32 %v318, 2.0
          %v320 = vadd.f32 %v319, 1e-05
          %v321 = vld [vmem:[#allocation3] sm:$0xf]
          %v322 = vld [vmem:[#allocation4] sm:$0xf]
          %v323 = vadd.f32 %v321, %v322
          %v324 = vadd.f32 %v323, 1e-05
          %v325 = vrcp.pop %v324
          %v326 = vmul.f32 %v320, %v325
          %v327 = vld [vmem:[%s2] sm:$0xf]
          %v328 = vsub.f32 1.0, %v326
          %v329 = vmul.f32 %v327, %v328
          %v330 = vsel %vm280, %v329, 0.0
          %331 = vadd.xlane.f32.xlu0 %v330
          %v332 = vpop.xlane.xlu0 %331
          %v333 = vrot.slane %v332, 4
          %v334 = vadd.f32 %v332, %v333
          %v335 = vrot.slane %v334, 2
          %v336 = vadd.f32 %v334, %v335
          %v337 = vrot.slane %v336, 1
          %v338 = vadd.f32 %v336, %v337
          %s339 = vtos %v338
          %v340 = vstv %s339
          %341 = vst [vmem:[%s225] sm:$0x1] %v340
        $region44: #{tpu_custom_call.1} parent=31 // pred_fallthru
          _
        %s342 = sand.u32 %s117, 1
        %s343 = scalar_lea.sflag [#allocation7], %s342
        %s344 = sand.u32 %s117, 1
        %s345 = scalar_lea.vmem [#allocation8], %s344
        // Predicated region
        $region45: #{tpu_custom_call.1} parent=31 // pred_check
          %p346 = pneg %p127
        $region46: #{tpu_custom_call.1} parent=31 // pred_check_branch
          %348 = sbr.rel (%p346) target = $region48
        $region47: #{tpu_custom_call.1} parent=31 // pred_region
          %s350 = ssub.s32 16, 16
          %351 = vsyncadd %s343, %s350
          %s352 = smul.addr %s24, 16
          %s353 = scalar_lea.hbm %s3, %s352
          %s355 = sshll.u32 %s345, 4
          %s356 = int_to_ptr.vmem [resolvable:$true] %s355
          %358 = dma.vmem_to_hbm [thread:$0]  %s356, 16, %s353, %s343
        $region48: #{tpu_custom_call.1} parent=31 // pred_fallthru
          _
      $region32: #{tpu_custom_call.1} parent=5 // pred_fallthru
        _
      %p359 = scmp.le.s32.totalorder 2, %s15
      // Predicated region
      $region49: #{tpu_custom_call.1} parent=5 // pred_check
        %p360 = pneg %p359
      $region50: #{tpu_custom_call.1} parent=5 // pred_check_branch
        %362 = sbr.rel (%p360) target = $region52
      $region51: #{tpu_custom_call.1} parent=5 // pred_region
        %s363 = ssub.s32 %s15, 2
        // Predicated region
        $region53: #{tpu_custom_call.1} parent=51 // pred_check
          %p364 = pneg %p133
        $region54: #{tpu_custom_call.1} parent=51 // pred_check_branch
          %366 = sbr.rel (%p364) target = $region56
        $region55: #{tpu_custom_call.1} parent=51 // pred_region
          %s367 = sand.u32 %s118, 1
          %s368 = scalar_lea.sflag [#allocation7], %s367
          %s369 = sand.u32 %s118, 1
          %s370 = scalar_lea.vmem [#allocation8], %s369
          %371 = dma.done %s368, 16
        $region56: #{tpu_custom_call.1} parent=51 // pred_fallthru
          _
      $region52: #{tpu_custom_call.1} parent=5 // pred_fallthru
        _
    $region6: #{tpu_custom_call.1} parent=1 // loop_footer
      %s19 = sadd.s32 1, %s15
    $region7: #{tpu_custom_call.1} parent=1 // loop_footer_branch
      %14 = sbr.rel target = $region3
    $region8: #{tpu_custom_call.1} parent=1 // loop_exit
      _
    %372 = vsyncpa [#allocation6], 1
    %s373 = scalar_lea.sflag [#allocation6], 1
    %374 = vsyncpa %s373, 1
    %375 = vsyncpa [#allocation7], 1
    %s376 = scalar_lea.sflag [#allocation7], 1
    %377 = vsyncpa %s376, 1

</llo_original>
